<compile_context>
chip_gen: v7x
topology: tpu7x:2x2x1
jax: 0.10.0
libtpu: 0.0.40
codegen_flags: <defaults>
</compile_context>

<pallas_src>
import functools
import math

import jax
import jax.numpy as jnp
from jax.experimental import pallas as pl
from jax.experimental.pallas import tpu as pltpu

LANES = 128
CHUNK_R = 256            # rows per in-kernel compute/accumulate chunk (128 KiB f32)
MAX_TILE_R = 8192        # rows per grid-step DMA block (4 MiB f32 per input)
MIN_GRID = 4             # aim for >= this many blocks so DMA/compute pipeline
EPS = 0.001
VMEM_LIMIT_BYTES = 40 * 1024 * 1024


def _round_up(a, b):
    return ((a + b - 1) // b) * b


def _int_pow(base, n):
    """base**n for small positive integer n via repeated multiplies (VPU only)."""
    result = None
    cur = base
    while n:
        if n & 1:
            result = cur if result is None else result * cur
        n >>= 1
        if n:
            cur = cur * cur
    return result


def _focal_loss_kernel(x_ref, t_ref, w_ref, out_ref, *, gamma, n_rows, tile_r,
                       chunk_r, n_chunks, inner_grid, mask_rows):
    c = pl.program_id(0)                           # core-split axis ("parallel")
    i = pl.program_id(1)                           # row-block axis ("arbitrary")
    block_row0 = (c * inner_grid + i) * tile_r     # UNclamped global start row

    @pl.when(i == 0)
    def _():
        out_ref[...] = jnp.zeros_like(out_ref)     # per-core resident accumulator

    def accumulate(k, carry):
        if n_chunks == 1:
            r0 = 0
            x = x_ref[...].astype(jnp.float32)
            t = t_ref[...].astype(jnp.float32)
            w = w_ref[...].astype(jnp.float32)
        else:
            r0 = pl.multiple_of(k * chunk_r, chunk_r)
            x = x_ref[pl.ds(r0, chunk_r), :].astype(jnp.float32)
            t = t_ref[pl.ds(r0, chunk_r), :].astype(jnp.float32)
            w = w_ref[pl.ds(r0, chunk_r), :].astype(jnp.float32)

        # binary_cross_entropy_with_logits, reduction='none' (numerically stable)
        bce = jnp.maximum(x, 0.0) - x * t + jnp.log1p(jnp.exp(-jnp.abs(x)))

        # focal core: weight * (1 - exp(-bce) + 0.001)**gamma * bce
        base = 1.0 - jnp.exp(-bce) + EPS           # base >= EPS > 0
        if float(gamma).is_integer() and 1 <= int(gamma) <= 8:
            powed = _int_pow(base, int(gamma))     # VPU-only: keeps EUP at 3/elem
        else:
            powed = jnp.exp(gamma * jnp.log(base))  # general real gamma (base > 0)
        focal = w * powed * bce                    # + log(gamma) hoisted outside

        if mask_rows:
            # Partial last block / clamped duplicate block: zero undefined rows.
            # Must stay a select (NOT a multiplicative mask): garbage rows can be NaN.
            row = jax.lax.broadcasted_iota(jnp.int32, focal.shape, 0)
            focal = jnp.where(block_row0 + r0 + row < n_rows, focal, 0.0)

        out_ref[...] += focal
        return carry

    if n_chunks == 1:
        accumulate(0, 0)
    else:
        jax.lax.fori_loop(0, n_chunks, accumulate, 0)


def focal_loss(logits, targets, weight, gamma):
    """Scalar mean focal loss, matching the PyTorch module's forward.

    Inputs may be any float dtype (bf16 preferred: halves HBM traffic); the
    kernel casts to f32 in-register and accumulates in f32.
    """
    assert logits.shape == targets.shape == weight.shape
    gamma = float(gamma)
    assert gamma > 0.0, "log(gamma) requires gamma > 0"

    n_valid = int(logits.size)
    if n_valid == 0:
        return jnp.float32(float("nan"))   # torch: mean of an empty tensor is NaN

    x = logits.reshape(-1)
    t = targets.reshape(-1)
    w = weight.reshape(-1)

    # Pad to a multiple of 128 lanes only if needed.  Zero-padded elements
    # contribute exactly 0 to the sum because weight == 0 there.
    pad = (-n_valid) % LANES
    if pad:
        x = jnp.pad(x, (0, pad))
        t = jnp.pad(t, (0, pad))
        w = jnp.pad(w, (0, pad))
    n_rows = (n_valid + pad) // LANES

    x2 = x.reshape(n_rows, LANES)
    t2 = t.reshape(n_rows, LANES)
    w2 = w.reshape(n_rows, LANES)

    # ---- tiling ----
    if n_rows <= CHUNK_R:
        tile_r, chunk_r, n_chunks = n_rows, n_rows, 1       # single full-extent block
    else:
        tile_r = min(MAX_TILE_R, _round_up(pl.cdiv(n_rows, MIN_GRID), CHUNK_R))
        chunk_r, n_chunks = CHUNK_R, tile_r // CHUNK_R
    grid_r = pl.cdiv(n_rows, tile_r)
    num_splits = 2 if grid_r >= 2 else 1        # 2-TC split on v7x; no-op on 1-TC chips
    inner_grid = pl.cdiv(grid_r, num_splits)
    mask_rows = (n_rows % tile_r != 0) or (inner_grid * num_splits != grid_r)

    if inner_grid * num_splits == grid_r:
        def row_block(c, i):
            return (c * inner_grid + i, 0)
    else:
        def row_block(c, i):
            # Clamp to a valid block; the duplicated block is fully masked in-kernel
            # (its unclamped start row is >= n_rows), so it contributes exactly 0.
            return (jnp.minimum(c * inner_grid + i, grid_r - 1), 0)

    in_spec = pl.BlockSpec((tile_r, LANES), row_block)
    out_spec = pl.BlockSpec((chunk_r, LANES), lambda c, i: (c, 0))  # per-core slab

    partial = pl.pallas_call(
        functools.partial(_focal_loss_kernel, gamma=gamma, n_rows=n_rows,
                          tile_r=tile_r, chunk_r=chunk_r, n_chunks=n_chunks,
                          inner_grid=inner_grid, mask_rows=mask_rows),
        out_shape=jax.ShapeDtypeStruct((num_splits * chunk_r, LANES), jnp.float32),
        grid_spec=pltpu.PrefetchScalarGridSpec(
            num_scalar_prefetch=0,
            grid=(num_splits, inner_grid),
            in_specs=[in_spec, in_spec, in_spec],
            out_specs=out_spec,
        ),
        compiler_params=pltpu.CompilerParams(
            dimension_semantics=("parallel", "arbitrary"),
            vmem_limit_bytes=VMEM_LIMIT_BYTES),
    )(x2, t2, w2)

    # Tiny wrapper-side reduce of the per-core partial-sum slabs.
    return jnp.sum(partial) / jnp.float32(n_valid) + jnp.float32(math.log(gamma))


def _reference(logits, targets, weight, gamma):
    x = logits.astype(jnp.float32)
    t = targets.astype(jnp.float32)
    w = weight.astype(jnp.float32)
    bce = jnp.maximum(x, 0.0) - x * t + jnp.log1p(jnp.exp(-jnp.abs(x)))
    focal = w * jnp.power(1.0 - jnp.exp(-bce) + EPS, jnp.float32(gamma)) * bce
    return jnp.mean(focal + jnp.log(jnp.float32(gamma)))


if __name__ == "__main__":
    key = jax.random.PRNGKey(0)

    # (shape, dtype, gamma): covers the small single-block path, the ragged
    # lane-pad path, the 2-way-split masked-tail path, the odd-grid clamped
    # duplicate-block path (bf16), the multi-chunk path, and non-integer gamma.
    cases = [
        ((2, 4, 16, 16), jnp.float32, 2.0),    # 2048 elems  -> single (16,128) block
        ((2, 3, 25, 31), jnp.float32, 2.0),    # 4650 elems  -> 128-pad, single block
        ((3, 5, 64, 40), jnp.float32, 2.0),    # 300 rows    -> 2-way split, masked tail
        ((5, 4, 64, 64), jnp.bfloat16, 2.0),   # 640 rows    -> odd grid, clamped dup block
        ((4, 8, 96, 128), jnp.float32, 2.0),   # 3072 rows   -> split + multi-chunk blocks
        ((2, 4, 16, 16), jnp.float32, 2.5),    # non-integer gamma (exp/log path)
    ]

    for shape, dtype, gamma in cases:
        key, k1, k2, k3 = jax.random.split(key, 4)
        logits = jax.random.normal(k1, shape, dtype=jnp.float32).astype(dtype)
        targets = jax.random.bernoulli(k2, 0.5, shape).astype(dtype)
        weight = jax.random.uniform(k3, shape, dtype=jnp.float32,
                                    minval=0.5, maxval=1.5).astype(dtype)

        loss = focal_loss(logits, targets, weight, gamma)
        jax.block_until_ready(loss)

        ref = _reference(logits, targets, weight, gamma)
        assert jnp.allclose(loss, ref, atol=1e-4, rtol=1e-4), (shape, dtype, loss, ref)

    print("KERNEL_OK")
</pallas_src>

<mosaic_0001>
module attributes {stable_mosaic.version = 11 : i64} {
  func.func @_focal_loss_kernel(%arg0: i32, %arg1: i32, %arg2: memref<16x128xf32, #tpu.memory_space<vmem>>, %arg3: memref<16x128xf32, #tpu.memory_space<vmem>>, %arg4: memref<16x128xf32, #tpu.memory_space<vmem>>, %arg5: memref<16x128xf32, #tpu.memory_space<vmem>>) attributes {dimension_semantics = [#tpu.dimension_semantics<parallel>, #tpu.dimension_semantics<arbitrary>], iteration_bounds = array<i64: 1, 1>, scalar_prefetch = 0 : i64, scratch_operands = 0 : i64, tpu.core_type = #tpu.core_type<tc>, window_params = [{transform_indices = @transform_0, window_bounds = array<i64: 16, 128>}, {transform_indices = @transform_1, window_bounds = array<i64: 16, 128>}, {transform_indices = @transform_2, window_bounds = array<i64: 16, 128>}, {transform_indices = @transform_3, window_bounds = array<i64: 16, 128>}]} {
    %c0_i32 = arith.constant 0 : i32
    %0 = arith.cmpi eq, %arg1, %c0_i32 : i32
    %1 = arith.extui %0 : i1 to i32
    %c0_i32_0 = arith.constant 0 : i32
    %2 = arith.cmpi ne, %1, %c0_i32_0 : i32
    scf.if %2 {
      %cst_14 = arith.constant 0.000000e+00 : f32
      %29 = vector.broadcast %cst_14 : f32 to vector<16x128xf32>
      %c0_15 = arith.constant 0 : index
      %c0_16 = arith.constant 0 : index
      %30 = vector.load %arg5[%c0_15, %c0_16] : memref<16x128xf32, #tpu.memory_space<vmem>>, vector<16x128xf32>
      tpu.vector_store %arg5[%c0_15, %c0_16], %29 {strides = array<i32>} : memref<16x128xf32, #tpu.memory_space<vmem>>, vector<16x128xf32>,
    } else {
    }
    %c0 = arith.constant 0 : index
    %c0_1 = arith.constant 0 : index
    %3 = vector.load %arg2[%c0, %c0_1] : memref<16x128xf32, #tpu.memory_space<vmem>>, vector<16x128xf32>
    %c0_2 = arith.constant 0 : index
    %c0_3 = arith.constant 0 : index
    %4 = vector.load %arg3[%c0_2, %c0_3] : memref<16x128xf32, #tpu.memory_space<vmem>>, vector<16x128xf32>
    %c0_4 = arith.constant 0 : index
    %c0_5 = arith.constant 0 : index
    %5 = vector.load %arg4[%c0_4, %c0_5] : memref<16x128xf32, #tpu.memory_space<vmem>>, vector<16x128xf32>
    %cst = arith.constant 0.000000e+00 : f32
    %6 = vector.broadcast %cst : f32 to vector<16x128xf32>
    %7 = arith.maximumf %3, %6 : vector<16x128xf32>
    %8 = arith.mulf %3, %4 : vector<16x128xf32>
    %9 = arith.subf %7, %8 : vector<16x128xf32>
    %10 = math.absf %3 : vector<16x128xf32>
    %cst_6 = arith.constant 0.000000e+00 : f32
    %11 = vector.broadcast %cst_6 : f32 to vector<16x128xf32>
    %12 = arith.subf %11, %10 : vector<16x128xf32>
    %13 = math.exp %12 : vector<16x128xf32>
    %14 = math.log1p %13 : vector<16x128xf32>
    %15 = arith.addf %9, %14 : vector<16x128xf32>
    %cst_7 = arith.constant 0.000000e+00 : f32
    %16 = vector.broadcast %cst_7 : f32 to vector<16x128xf32>
    %17 = arith.subf %16, %15 : vector<16x128xf32>
    %18 = math.exp %17 : vector<16x128xf32>
    %cst_8 = arith.constant 1.000000e+00 : f32
    %19 = vector.broadcast %cst_8 : f32 to vector<16x128xf32>
    %20 = arith.subf %19, %18 : vector<16x128xf32>
    %cst_9 = arith.constant 1.000000e-03 : f32
    %21 = vector.broadcast %cst_9 : f32 to vector<16x128xf32>
    %22 = arith.addf %20, %21 : vector<16x128xf32>
    %23 = arith.mulf %22, %22 : vector<16x128xf32>
    %24 = arith.mulf %5, %23 : vector<16x128xf32>
    %25 = arith.mulf %24, %15 : vector<16x128xf32>
    %c0_10 = arith.constant 0 : index
    %c0_11 = arith.constant 0 : index
    %26 = vector.load %arg5[%c0_10, %c0_11] : memref<16x128xf32, #tpu.memory_space<vmem>>, vector<16x128xf32>
    %27 = arith.addf %26, %25 : vector<16x128xf32>
    %c0_12 = arith.constant 0 : index
    %c0_13 = arith.constant 0 : index
    %28 = vector.load %arg5[%c0_12, %c0_13] : memref<16x128xf32, #tpu.memory_space<vmem>>, vector<16x128xf32>
    tpu.vector_store %arg5[%c0_12, %c0_13], %27 {strides = array<i32>} : memref<16x128xf32, #tpu.memory_space<vmem>>, vector<16x128xf32>,
    return
  }
  func.func @transform_0(%arg0: i32, %arg1: i32) -> (i32, i32) {
    %c1_i32 = arith.constant 1 : i32
    %0 = arith.muli %arg0, %c1_i32 : i32
    %1 = arith.addi %0, %arg1 : i32
    %c0_i32 = arith.constant 0 : i32
    %c0_i32_0 = arith.constant 0 : i32
    return %1, %c0_i32 : i32, i32
  }
  func.func @transform_1(%arg0: i32, %arg1: i32) -> (i32, i32) {
    %c1_i32 = arith.constant 1 : i32
    %0 = arith.muli %arg0, %c1_i32 : i32
    %1 = arith.addi %0, %arg1 : i32
    %c0_i32 = arith.constant 0 : i32
    %c0_i32_0 = arith.constant 0 : i32
    return %1, %c0_i32 : i32, i32
  }
  func.func @transform_2(%arg0: i32, %arg1: i32) -> (i32, i32) {
    %c1_i32 = arith.constant 1 : i32
    %0 = arith.muli %arg0, %c1_i32 : i32
    %1 = arith.addi %0, %arg1 : i32
    %c0_i32 = arith.constant 0 : i32
    %c0_i32_0 = arith.constant 0 : i32
    return %1, %c0_i32 : i32, i32
  }
  func.func @transform_3(%arg0: i32, %arg1: i32) -> (i32, i32) {
    %c0_i32 = arith.constant 0 : i32
    %c0_i32_0 = arith.constant 0 : i32
    return %arg0, %c0_i32 : i32, i32
  }
}

</mosaic_0001>

<llo_original>
// kernel: tpu_custom_call.1
$region0: #{tpu_custom_call.1}
  #allocation0 [shape = 'u32[]', space=smem, size = 0x4, offset = 0x4, fixed_abs, tag = 'smem constant byte address 0x4 - core index']
  #allocation1 [shape = 'u32[144,128]{1,0:T(1,128)}', space=vmem, size = 0x12000, scoped, tag = 'internal scratch']
  %s0 = inlined_call_operand.hbm [shape: f32[16,128], index: 0, kind: input, shape index: {}]
  %s1 = inlined_call_operand.hbm [shape: f32[16,128], index: 1, kind: input, shape index: {}]
  %s2 = inlined_call_operand.hbm [shape: f32[16,128], index: 2, kind: input, shape index: {}]
  %s3 = inlined_call_operand.hbm [shape: f32[16,128], index: 3, kind: output, shape index: {}]
  %s4 = sld [smem:[#allocation0]]
  $region38: #{tpu_custom_call.1} parent=0
    _
  %s6 = ssub.s32 1, %s4
  %s7 = scalar_select 0, %s6, %s4
  $region1: #{tpu_custom_call.1} parent=0
    #allocation2 [shape = 'u8[8192]{0}', space=vmem, size = 0x2000, scoped, tag = 'input window, operand 0, single buffered']
    #allocation3 [shape = 's32[1]{0}', space=sflag, size = 0x4, scoped, tag = 'scoped memory for tpu_custom_call.1']
    #allocation4 [shape = 's32[1]{0}', space=sflag, size = 0x4, scoped, tag = 'scoped memory for tpu_custom_call.1']
    #allocation5 [shape = 'u8[8192]{0}', space=vmem, size = 0x2000, scoped, tag = 'input window, operand 1, single buffered']
    #allocation6 [shape = 's32[1]{0}', space=sflag, size = 0x4, scoped, tag = 'scoped memory for tpu_custom_call.1']
    #allocation7 [shape = 'u8[8192]{0}', space=vmem, size = 0x2000, scoped, tag = 'input window, operand 2, single buffered']
    #allocation8 [shape = 'u8[8192]{0}', space=vmem, size = 0x2000, scoped, tag = 'output window, operand 0, single buffered']
    %8 = vsyncpa [#allocation3], 0
    %9 = vsyncpa [#allocation6], 0
    %10 = vsyncpa [#allocation4], 0
    // Predicated region
    $region2: #{tpu_custom_call.1} parent=1 // pred_check
      _
    $region3: #{tpu_custom_call.1} parent=1 // pred_check_branch
      %12 = sbr.rel (0) target = $region5
    $region4: #{tpu_custom_call.1} parent=1 // pred_region
      %s13 = sadd.s32 0, 0
      %s14 = smul.u32 2, %s13
      %s16 = ssub.s32 256, 256
      %17 = vsyncadd [#allocation3], %s16
      %s18 = smul.addr %s14, 128
      %s19 = scalar_lea.hbm %s0, %s18
      %s20 = sshll.u32 [#allocation2], 4
      %s21 = int_to_ptr.vmem [resolvable:$true] %s20
      %26 = dma.hbm_to_vmem [thread:$0]  %s19, 256, %s21, [#allocation3], 128, 128, 8
    $region5: #{tpu_custom_call.1} parent=1 // pred_fallthru
      _
    // Predicated region
    $region6: #{tpu_custom_call.1} parent=1 // pred_check
      _
    $region7: #{tpu_custom_call.1} parent=1 // pred_check_branch
      %28 = sbr.rel (0) target = $region9
    $region8: #{tpu_custom_call.1} parent=1 // pred_region
      %s29 = sadd.s32 0, 0
      %s30 = smul.u32 2, %s29
      %s32 = ssub.s32 256, 256
      %33 = vsyncadd [#allocation6], %s32
      %s34 = smul.addr %s30, 128
      %s35 = scalar_lea.hbm %s1, %s34
      %s36 = sshll.u32 [#allocation5], 4
      %s37 = int_to_ptr.vmem [resolvable:$true] %s36
      %42 = dma.hbm_to_vmem [thread:$0]  %s35, 256, %s37, [#allocation6], 128, 128, 8
    $region9: #{tpu_custom_call.1} parent=1 // pred_fallthru
      _
    // Predicated region
    $region10: #{tpu_custom_call.1} parent=1 // pred_check
      _
    $region11: #{tpu_custom_call.1} parent=1 // pred_check_branch
      %44 = sbr.rel (0) target = $region13
    $region12: #{tpu_custom_call.1} parent=1 // pred_region
      %s45 = sadd.s32 0, 0
      %s46 = smul.u32 2, %s45
      %s48 = ssub.s32 256, 256
      %49 = vsyncadd [#allocation6], %s48
      %s50 = smul.addr %s46, 128
      %s51 = scalar_lea.hbm %s2, %s50
      %s52 = sshll.u32 [#allocation7], 4
      %s53 = int_to_ptr.vmem [resolvable:$true] %s52
      %58 = dma.hbm_to_vmem [thread:$0]  %s51, 256, %s53, [#allocation6], 128, 128, 8
    $region13: #{tpu_custom_call.1} parent=1 // pred_fallthru
      _
    // Predicated region
    $region14: #{tpu_custom_call.1} parent=1 // pred_check
      _
    $region15: #{tpu_custom_call.1} parent=1 // pred_check_branch
      %60 = sbr.rel (0) target = $region17
    $region16: #{tpu_custom_call.1} parent=1 // pred_region
      %61 = dma.done [#allocation3], 256
    $region17: #{tpu_custom_call.1} parent=1 // pred_fallthru
      _
    // Predicated region
    $region18: #{tpu_custom_call.1} parent=1 // pred_check
      _
    $region19: #{tpu_custom_call.1} parent=1 // pred_check_branch
      %63 = sbr.rel (0) target = $region21
    $region20: #{tpu_custom_call.1} parent=1 // pred_region
      %64 = dma.done [#allocation6], 256
    $region21: #{tpu_custom_call.1} parent=1 // pred_fallthru
      _
    // Predicated region
    $region22: #{tpu_custom_call.1} parent=1 // pred_check
      _
    $region23: #{tpu_custom_call.1} parent=1 // pred_check_branch
      %66 = sbr.rel (0) target = $region25
    $region24: #{tpu_custom_call.1} parent=1 // pred_region
      %67 = dma.done [#allocation6], 256
    $region25: #{tpu_custom_call.1} parent=1 // pred_fallthru
      _
    %s68 = sadd.s32 0, 0
    %s69 = smul.u32 2, %s68
    %s70 = sadd.s32 0, 0
    %s71 = smul.u32 2, %s70
    %s72 = sadd.s32 0, 0
    %s73 = smul.u32 2, %s72
    %p74 = scmp.eq.s32.totalorder 0, 0
    // Predicated region
    $region26: #{tpu_custom_call.1} parent=1 // pred_check
      %p75 = pneg %p74
    $region27: #{tpu_custom_call.1} parent=1 // pred_check_branch
      %77 = sbr.rel (%p75) target = $region29
    $region28: #{tpu_custom_call.1} parent=1 // pred_region
      %78 = vst [vmem:[#allocation8] sm:$0xff] 0.0
      %79 = vst [vmem:[#allocation8 + $0x8] sm:$0xff] 0.0
    $region29: #{tpu_custom_call.1} parent=1 // pred_fallthru
      _
    %v80 = vld [vmem:[#allocation2] sm:$0xff]
    %v81 = vld [vmem:[#allocation2 + $0x8] sm:$0xff]
    %v82 = vld [vmem:[#allocation5] sm:$0xff]
    %v83 = vld [vmem:[#allocation5 + $0x8] sm:$0xff]
    %v84 = vld [vmem:[#allocation7] sm:$0xff]
    %v85 = vld [vmem:[#allocation7 + $0x8] sm:$0xff]
    %v86 = vmax.f32 %v80, 0.0
    %v87 = vmax.f32 %v81, 0.0
    %v88 = vmul.f32 %v80, %v82
    %v89 = vmul.f32 %v81, %v83
    %v90 = vsub.f32 %v86, %v88
    %v91 = vsub.f32 %v87, %v89
    %v92 = vand.u32 2147483647, %v80
    %v93 = vand.u32 2147483647, %v81
    %v94 = vsub.f32 0.0, %v92
    %v95 = vsub.f32 0.0, %v93
    %v96 = vmul.f32 %v94, 1.442695
    %v97 = vpow.pop %v96
    %v98 = vmul.f32 %v95, 1.442695
    %v99 = vpow.pop %v98
    %v100 = vadd.f32 %v97, 1.0
    %v101 = vlog2.pop %v100
    %v102 = vmul.f32 %v101, 0.6931472
    %v103 = vmul.f32 -0.5, %v97
    %v104 = vadd.f32 %v103, 1.0
    %v105 = vmul.f32 %v104, %v97
    %v106 = vand.u32 2147483647, %v97
    %vm107 = vcmp.lt.f32.partialorder %v106, 0.0004427343
    %v108 = vsel %vm107, %v105, %v102
    %v109 = vadd.f32 %v99, 1.0
    %v110 = vlog2.pop %v109
    %v111 = vmul.f32 %v110, 0.6931472
    %v112 = vmul.f32 -0.5, %v99
    %v113 = vadd.f32 %v112, 1.0
    %v114 = vmul.f32 %v113, %v99
    %v115 = vand.u32 2147483647, %v99
    %vm116 = vcmp.lt.f32.partialorder %v115, 0.0004427343
    %v117 = vsel %vm116, %v114, %v111
    %v118 = vadd.f32 %v90, %v108
    %v119 = vadd.f32 %v91, %v117
    %v120 = vsub.f32 0.0, %v118
    %v121 = vsub.f32 0.0, %v119
    %v122 = vmul.f32 %v120, 1.442695
    %v123 = vpow.pop %v122
    %v124 = vmul.f32 %v121, 1.442695
    %v125 = vpow.pop %v124
    %v126 = vsub.f32 1.0, %v123
    %v127 = vsub.f32 1.0, %v125
    %v128 = vadd.f32 %v126, 0.001
    %v129 = vadd.f32 %v127, 0.001
    %v130 = vmul.f32 %v128, %v128
    %v131 = vmul.f32 %v129, %v129
    %v132 = vmul.f32 %v84, %v130
    %v133 = vmul.f32 %v85, %v131
    %v134 = vmul.f32 %v132, %v118
    %v135 = vmul.f32 %v133, %v119
    %v136 = vld [vmem:[#allocation8] sm:$0xff]
    %v137 = vld [vmem:[#allocation8 + $0x8] sm:$0xff]
    %v138 = vadd.f32 %v136, %v134
    %v139 = vadd.f32 %v137, %v135
    %140 = vst [vmem:[#allocation8] sm:$0xff] %v138
    %141 = vst [vmem:[#allocation8 + $0x8] sm:$0xff] %v139
    // Predicated region
    $region30: #{tpu_custom_call.1} parent=1 // pred_check
      _
    $region31: #{tpu_custom_call.1} parent=1 // pred_check_branch
      %143 = sbr.rel (0) target = $region33
    $region32: #{tpu_custom_call.1} parent=1 // pred_region
      %s145 = ssub.s32 256, 256
      %146 = vsyncadd [#allocation4], %s145
      %s147 = sshll.u32 [#allocation8], 4
      %s148 = int_to_ptr.vmem [resolvable:$true] %s147
      %153 = dma.vmem_to_hbm [thread:$0]  %s148, 256, %s3, [#allocation4], 128, 128, 8
    $region33: #{tpu_custom_call.1} parent=1 // pred_fallthru
      _
    // Predicated region
    $region34: #{tpu_custom_call.1} parent=1 // pred_check
      _
    $region35: #{tpu_custom_call.1} parent=1 // pred_check_branch
      %155 = sbr.rel (0) target = $region37
    $region36: #{tpu_custom_call.1} parent=1 // pred_region
      %156 = dma.done [#allocation4], 256
    $region37: #{tpu_custom_call.1} parent=1 // pred_fallthru
      _
    %157 = vsyncpa [#allocation3], 1
    %158 = vsyncpa [#allocation6], 1
    %159 = vsyncpa [#allocation4], 1

</llo_original>
